<compile_context>
chip_gen: v7x
topology: tpu7x:2x2x1
jax: 0.10.0
libtpu: 0.0.40
codegen_flags: <defaults>
</compile_context>

<pallas_src>
import jax
import jax.numpy as jnp
import numpy as np
from jax.experimental import pallas as pl
from jax.experimental.pallas import tpu as pltpu


def _round_up(x, m):
    return (x + m - 1) // m * m


def _graphspn_kernel(x_ref, lpn_ref, ewn_ref, a_ref, lpe_ref, ewe_ref, o_ref):
    # One-hot inputs arrive as int8 (0/1 is exact); upcast in-register (VPU).
    x = x_ref[...].astype(jnp.float32)                                   # (TB, Dn)
    a = a_ref[...].astype(jnp.float32)                                   # (TB, De)

    # Leaf layer + product over variables == one-hot contraction with the
    # transposed log-prob tables -> per-component joint log-likelihood (MXU).
    ll_n = jnp.dot(x, lpn_ref[...], preferred_element_type=jnp.float32)  # (TB, ni_n)
    ll_e = jnp.dot(a, lpe_ref[...], preferred_element_type=jnp.float32)  # (TB, ni_e)

    # Root sum node per class, vectorized over classes:
    #   logsumexp_i(ll + logw) = log( exp(ll - m) @ exp(logw).T ) + m
    m_n = jnp.max(ll_n, axis=-1, keepdims=True)                          # (TB, 1)
    m_e = jnp.max(ll_e, axis=-1, keepdims=True)                          # (TB, 1)
    s_n = jnp.dot(jnp.exp(ll_n - m_n), ewn_ref[...],
                  preferred_element_type=jnp.float32)                    # (TB, nc)
    s_e = jnp.dot(jnp.exp(ll_e - m_e), ewe_ref[...],
                  preferred_element_type=jnp.float32)                    # (TB, nc)

    # Single store of the full per-tile output (nc lanes; tiny, masked store OK).
    o_ref[...] = (jnp.log(s_n) + m_n + jnp.log(s_e) + m_e).astype(o_ref.dtype)


def prepare_graphspn_params(logp_n, logw_n, logp_e, logw_e):
    """One-time parameter layout prep (do at model init, not per forward call)."""
    lpn_t = logp_n.reshape(logp_n.shape[0], -1).T.astype(jnp.float32)    # (Dn, ni_n)
    lpe_t = logp_e.reshape(logp_e.shape[0], -1).T.astype(jnp.float32)    # (De, ni_e)
    ewn = jnp.exp(logw_n).T.astype(jnp.float32)                          # (ni_n, nc)
    ewe = jnp.exp(logw_e).T.astype(jnp.float32)                          # (ni_e, nc)
    return lpn_t, ewn, lpe_t, ewe


def graphspn_forward(x_oh, a_oh, params, *, tb=1024):
    """Pallas implementation of GraphSPNNaiveCore.forward (regime='cat').

    x_oh:   (B, nd_n, nk_n)        one-hot node types (any numeric dtype)
    a_oh:   (B, nd_n, nd_n, nk_e)  one-hot edge types (any numeric dtype)
    params: output of prepare_graphspn_params(...)
    returns (B, nc) log-likelihoods.
    """
    lpn_t, ewn, lpe_t, ewe = params
    B = x_oh.shape[0]
    nc = ewn.shape[1]
    Dn = lpn_t.shape[0]
    De = lpe_t.shape[0]

    # int8 transport of the (dominant) one-hot operands; exact for 0/1 values.
    # (No-op if the caller already supplies int8 one-hots.)
    x_flat = x_oh.reshape(B, -1).astype(jnp.int8)                        # (B, Dn)
    a_flat = a_oh.reshape(B, -1).astype(jnp.int8)                        # (B, De)
    assert x_flat.shape[1] == Dn and a_flat.shape[1] == De

    # Batch tile: multiple of 32 sublanes (clean int8 packing), clamped so the
    # double-buffered tiles fit a conservative VMEM budget on every generation.
    bytes_per_row = Dn + De + nc * 4                      # int8 inputs + f32 output
    budget = 24 << 20
    max_rows = max(32, ((budget // (2 * bytes_per_row)) // 32) * 32)
    TB = min(_round_up(min(tb, max(B, 1)), 32), max_rows)
    B_pad = _round_up(B, TB)
    if B_pad != B:
        # Zero rows are harmless (ll = 0 -> finite output) and sliced off below.
        x_flat = jnp.pad(x_flat, ((0, B_pad - B), (0, 0)))
        a_flat = jnp.pad(a_flat, ((0, B_pad - B), (0, 0)))
    nb = B_pad // TB

    # Scoped-VMEM budget: double-buffered batch tiles + resident tables + headroom.
    tile_bytes = 2 * (TB * Dn + TB * De + TB * nc * 4)
    table_bytes = 4 * (Dn * lpn_t.shape[1] + De * lpe_t.shape[1] + ewn.size + ewe.size)
    vmem_limit = int(min(max(2 * (tile_bytes + table_bytes) + (4 << 20), 16 << 20),
                         64 << 20))

    grid_spec = pltpu.PrefetchScalarGridSpec(
        num_scalar_prefetch=0,
        grid=(nb,),
        in_specs=[
            pl.BlockSpec((TB, Dn), lambda i: (i, 0)),      # batch-tiled one-hot nodes
            pl.BlockSpec(lpn_t.shape, lambda i: (0, 0)),   # resident leaf table (nodes)
            pl.BlockSpec(ewn.shape, lambda i: (0, 0)),     # resident mixture weights
            pl.BlockSpec((TB, De), lambda i: (i, 0)),      # batch-tiled one-hot edges
            pl.BlockSpec(lpe_t.shape, lambda i: (0, 0)),   # resident leaf table (edges)
            pl.BlockSpec(ewe.shape, lambda i: (0, 0)),     # resident mixture weights
        ],
        out_specs=pl.BlockSpec((TB, nc), lambda i: (i, 0)),
    )

    out = pl.pallas_call(
        _graphspn_kernel,
        grid_spec=grid_spec,
        out_shape=jax.ShapeDtypeStruct((B_pad, nc), jnp.float32),
        compiler_params=pltpu.CompilerParams(
            dimension_semantics=("parallel",),   # batch tiles are independent (2 TCs on v7x)
            vmem_limit_bytes=vmem_limit,
        ),
    )(x_flat, lpn_t, ewn, a_flat, lpe_t, ewe)

    return out[:B]


def _reference_forward(x_oh, a_oh, logp_n, logw_n, logp_e, logw_e):
    """Pure-JAX reference: ohe2cat -> leaf lookup -> product -> root mixture."""
    B = x_oh.shape[0]
    x_idx = jnp.argmax(x_oh, axis=-1)                          # (B, nd_n)   ohe2cat
    a_idx = jnp.argmax(a_oh, axis=-1).reshape(B, -1)           # (B, nd_e)   ohe2cat

    def leaf_ll(logp, idx):
        g = jnp.take_along_axis(logp[None, :, :, :],
                                idx[:, None, :, None], axis=3)[..., 0]   # (B, ni, nd)
        return jnp.sum(g, axis=-1)                                       # (B, ni)

    ll_n = leaf_ll(logp_n, x_idx)
    ll_e = leaf_ll(logp_e, a_idx)
    mix_n = jax.scipy.special.logsumexp(ll_n[:, None, :] + logw_n[None, :, :], axis=-1)
    mix_e = jax.scipy.special.logsumexp(ll_e[:, None, :] + logw_e[None, :, :], axis=-1)
    return mix_n + mix_e                                                 # (B, nc)


if __name__ == "__main__":
    # Small shapes consistent with the module's constructor arguments.
    B = 70           # batch (not a multiple of the tile -> tests padding)
    nc = 2           # num classes
    nd_n = 8         # number of nodes
    nk_n = 5         # node categories
    nd_e = nd_n * nd_n   # number of (flattened) edges
    nk_e = 4         # edge categories
    ni_n = 16        # input distributions, nodes network
    ni_e = 16        # input distributions, edges network

    key = jax.random.PRNGKey(0)
    k1, k2, k3, k4, k5, k6 = jax.random.split(key, 6)

    # Deterministic synthetic inputs (one-hot, as the 'cat' regime expects).
    # Built directly in int8 so the kernel DMAs 4x fewer bytes than f32 (0/1 exact).
    x_cat = jax.random.randint(k1, (B, nd_n), 0, nk_n)
    a_cat = jax.random.randint(k2, (B, nd_n, nd_n), 0, nk_e)
    x_oh = jax.nn.one_hot(x_cat, nk_n, dtype=jnp.int8)             # (B, nd_n, nk_n)
    a_oh = jax.nn.one_hot(a_cat, nk_e, dtype=jnp.int8)             # (B, nd_n, nd_n, nk_e)

    # Deterministic parameter init (normalized categorical leaves + mixture weights).
    logp_n = jax.nn.log_softmax(0.5 * jax.random.normal(k3, (ni_n, nd_n, nk_n)), axis=-1)
    logw_n = jax.nn.log_softmax(0.5 * jax.random.normal(k4, (nc, ni_n)), axis=-1)
    logp_e = jax.nn.log_softmax(0.5 * jax.random.normal(k5, (ni_e, nd_e, nk_e)), axis=-1)
    logw_e = jax.nn.log_softmax(0.5 * jax.random.normal(k6, (nc, ni_e)), axis=-1)

    # One-time parameter layout prep (equivalent to doing it at model init).
    params = prepare_graphspn_params(logp_n, logw_n, logp_e, logw_e)

    # tb=32 -> batch padded 70->96, grid=(3,): exercises tiling + pipelining + padding.
    out = graphspn_forward(x_oh, a_oh, params, tb=32)
    out = jax.block_until_ready(out)

    ref = _reference_forward(x_oh, a_oh, logp_n, logw_n, logp_e, logw_e)
    np.testing.assert_allclose(np.asarray(out), np.asarray(ref), rtol=1e-5, atol=1e-4)

    # logpdf == forward(...).mean(); cheap glue outside the kernel.
    _ = float(jnp.mean(out))

    print("KERNEL_OK")
</pallas_src>

<mosaic_0001>
module attributes {stable_mosaic.version = 11 : i64} {
  func.func @_graphspn_kernel(%arg0: i32, %arg1: memref<32x40xi8, #tpu.memory_space<vmem>>, %arg2: memref<40x16xf32, #tpu.memory_space<vmem>>, %arg3: memref<16x2xf32, #tpu.memory_space<vmem>>, %arg4: memref<32x256xi8, #tpu.memory_space<vmem>>, %arg5: memref<256x16xf32, #tpu.memory_space<vmem>>, %arg6: memref<16x2xf32, #tpu.memory_space<vmem>>, %arg7: memref<32x2xf32, #tpu.memory_space<vmem>>) attributes {dimension_semantics = [#tpu.dimension_semantics<parallel>], iteration_bounds = array<i64: 3>, scalar_prefetch = 0 : i64, scratch_operands = 0 : i64, tpu.core_type = #tpu.core_type<tc>, window_params = [{transform_indices = @transform_0, window_bounds = array<i64: 32, 40>}, {pipeline_mode = #tpu.pipeline_mode<synchronous>, transform_indices = @transform_1, window_bounds = array<i64: 40, 16>}, {pipeline_mode = #tpu.pipeline_mode<synchronous>, transform_indices = @transform_2, window_bounds = array<i64: 16, 2>}, {transform_indices = @transform_3, window_bounds = array<i64: 32, 256>}, {pipeline_mode = #tpu.pipeline_mode<synchronous>, transform_indices = @transform_4, window_bounds = array<i64: 256, 16>}, {pipeline_mode = #tpu.pipeline_mode<synchronous>, transform_indices = @transform_5, window_bounds = array<i64: 16, 2>}, {transform_indices = @transform_6, window_bounds = array<i64: 32, 2>}]} {
    %c0 = arith.constant 0 : index
    %c0_0 = arith.constant 0 : index
    %0 = vector.load %arg1[%c0, %c0_0] : memref<32x40xi8, #tpu.memory_space<vmem>>, vector<32x40xi8>
    %1 = arith.sitofp %0 : vector<32x40xi8> to vector<32x40xf32>
    %c0_1 = arith.constant 0 : index
    %c0_2 = arith.constant 0 : index
    %2 = vector.load %arg4[%c0_1, %c0_2] : memref<32x256xi8, #tpu.memory_space<vmem>>, vector<32x256xi8>
    %3 = arith.sitofp %2 : vector<32x256xi8> to vector<32x256xf32>
    %c0_3 = arith.constant 0 : index
    %c0_4 = arith.constant 0 : index
    %4 = vector.load %arg2[%c0_3, %c0_4] : memref<40x16xf32, #tpu.memory_space<vmem>>, vector<40x16xf32>
    %cst = arith.constant dense<0.000000e+00> : vector<32x16xf32>
    %5 = tpu.matmul %1, %4, %cst {dimension_numbers = #tpu.dot_dimension_numbers<[1], [0], [0], [1], [0, 0, 1, 1], [], []>} : vector<32x40xf32>, vector<40x16xf32>, vector<32x16xf32> -> vector<32x16xf32>
    %c0_5 = arith.constant 0 : index
    %c0_6 = arith.constant 0 : index
    %6 = vector.load %arg5[%c0_5, %c0_6] : memref<256x16xf32, #tpu.memory_space<vmem>>, vector<256x16xf32>
    %cst_7 = arith.constant dense<0.000000e+00> : vector<32x16xf32>
    %7 = tpu.matmul %3, %6, %cst_7 {dimension_numbers = #tpu.dot_dimension_numbers<[1], [0], [0], [1], [0, 0, 1, 1], [], []>} : vector<32x256xf32>, vector<256x16xf32>, vector<32x16xf32> -> vector<32x16xf32>
    %cst_8 = arith.constant dense<0xFF800000> : vector<32xf32>
    %8 = vector.multi_reduction <maximumf>, %5, %cst_8 [1] : vector<32x16xf32> to vector<32xf32>
    %9 = vector.shape_cast %8 : vector<32xf32> to vector<32x1xf32>
    %cst_9 = arith.constant dense<0xFF800000> : vector<32xf32>
    %10 = vector.multi_reduction <maximumf>, %7, %cst_9 [1] : vector<32x16xf32> to vector<32xf32>
    %11 = vector.shape_cast %10 : vector<32xf32> to vector<32x1xf32>
    %12 = vector.broadcast %9 : vector<32x1xf32> to vector<32x16xf32>
    %13 = arith.subf %5, %12 : vector<32x16xf32>
    %14 = math.exp %13 : vector<32x16xf32>
    %c0_10 = arith.constant 0 : index
    %c0_11 = arith.constant 0 : index
    %15 = vector.load %arg3[%c0_10, %c0_11] : memref<16x2xf32, #tpu.memory_space<vmem>>, vector<16x2xf32>
    %cst_12 = arith.constant dense<0.000000e+00> : vector<32x2xf32>
    %16 = tpu.matmul %14, %15, %cst_12 {dimension_numbers = #tpu.dot_dimension_numbers<[1], [0], [0], [1], [0, 0, 1, 1], [], []>} : vector<32x16xf32>, vector<16x2xf32>, vector<32x2xf32> -> vector<32x2xf32>
    %17 = vector.broadcast %11 : vector<32x1xf32> to vector<32x16xf32>
    %18 = arith.subf %7, %17 : vector<32x16xf32>
    %19 = math.exp %18 : vector<32x16xf32>
    %c0_13 = arith.constant 0 : index
    %c0_14 = arith.constant 0 : index
    %20 = vector.load %arg6[%c0_13, %c0_14] : memref<16x2xf32, #tpu.memory_space<vmem>>, vector<16x2xf32>
    %cst_15 = arith.constant dense<0.000000e+00> : vector<32x2xf32>
    %21 = tpu.matmul %19, %20, %cst_15 {dimension_numbers = #tpu.dot_dimension_numbers<[1], [0], [0], [1], [0, 0, 1, 1], [], []>} : vector<32x16xf32>, vector<16x2xf32>, vector<32x2xf32> -> vector<32x2xf32>
    %22 = math.log %16 : vector<32x2xf32>
    %23 = vector.broadcast %9 : vector<32x1xf32> to vector<32x2xf32>
    %24 = arith.addf %22, %23 : vector<32x2xf32>
    %25 = math.log %21 : vector<32x2xf32>
    %26 = arith.addf %24, %25 : vector<32x2xf32>
    %27 = vector.broadcast %11 : vector<32x1xf32> to vector<32x2xf32>
    %28 = arith.addf %26, %27 : vector<32x2xf32>
    %c0_16 = arith.constant 0 : index
    %c0_17 = arith.constant 0 : index
    %29 = vector.load %arg7[%c0_16, %c0_17] : memref<32x2xf32, #tpu.memory_space<vmem>>, vector<32x2xf32>
    tpu.vector_store %arg7[%c0_16, %c0_17], %28 {strides = array<i32>} : memref<32x2xf32, #tpu.memory_space<vmem>>, vector<32x2xf32>,
    return
  }
  func.func @transform_0(%arg0: i32) -> (i32, i32) {
    %c0_i32 = arith.constant 0 : i32
    %c0_i32_0 = arith.constant 0 : i32
    return %arg0, %c0_i32 : i32, i32
  }
  func.func @transform_1(%arg0: i32) -> (i32, i32) {
    %c0_i32 = arith.constant 0 : i32
    %c0_i32_0 = arith.constant 0 : i32
    %c0_i32_1 = arith.constant 0 : i32
    return %c0_i32, %c0_i32_0 : i32, i32
  }
  func.func @transform_2(%arg0: i32) -> (i32, i32) {
    %c0_i32 = arith.constant 0 : i32
    %c0_i32_0 = arith.constant 0 : i32
    %c0_i32_1 = arith.constant 0 : i32
    return %c0_i32, %c0_i32_0 : i32, i32
  }
  func.func @transform_3(%arg0: i32) -> (i32, i32) {
    %c0_i32 = arith.constant 0 : i32
    %c0_i32_0 = arith.constant 0 : i32
    return %arg0, %c0_i32 : i32, i32
  }
  func.func @transform_4(%arg0: i32) -> (i32, i32) {
    %c0_i32 = arith.constant 0 : i32
    %c0_i32_0 = arith.constant 0 : i32
    %c0_i32_1 = arith.constant 0 : i32
    return %c0_i32, %c0_i32_0 : i32, i32
  }
  func.func @transform_5(%arg0: i32) -> (i32, i32) {
    %c0_i32 = arith.constant 0 : i32
    %c0_i32_0 = arith.constant 0 : i32
    %c0_i32_1 = arith.constant 0 : i32
    return %c0_i32, %c0_i32_0 : i32, i32
  }
  func.func @transform_6(%arg0: i32) -> (i32, i32) {
    %c0_i32 = arith.constant 0 : i32
    %c0_i32_0 = arith.constant 0 : i32
    return %arg0, %c0_i32 : i32, i32
  }
}

</mosaic_0001>

<llo_original>
// kernel: tpu_custom_call.1
$region0: #{tpu_custom_call.1}
  #allocation0 [shape = 'u32[]', space=smem, size = 0x4, offset = 0x4, fixed_abs, tag = 'smem constant byte address 0x4 - core index']
  #allocation1 [shape = 'u32[144,128]{1,0:T(1,128)}', space=vmem, size = 0x12000, scoped, tag = 'internal scratch']
  %s0 = inlined_call_operand.vmem [shape: s8[96,40], index: 0, kind: input, shape index: {}]
  %s1 = inlined_call_operand.vmem [shape: f32[40,16], index: 1, kind: input, shape index: {}]
  %s2 = inlined_call_operand.vmem [shape: f32[16,2], index: 2, kind: input, shape index: {}]
  %s3 = inlined_call_operand.vmem [shape: s8[96,256], index: 3, kind: input, shape index: {}]
  %s4 = inlined_call_operand.vmem [shape: f32[256,16], index: 4, kind: input, shape index: {}]
  %s5 = inlined_call_operand.vmem [shape: f32[16,2], index: 5, kind: input, shape index: {}]
  %s6 = inlined_call_operand.vmem [shape: f32[96,2], index: 6, kind: output, shape index: {}]
  %s7 = sld [smem:[#allocation0]]
  $region57: #{tpu_custom_call.1} parent=0
    _
  %s9 = ssub.s32 1, %s7
  %s10 = scalar_select 0, %s9, %s7
  loop: start=0, step=1, limit=5
  $region2: #{tpu_custom_call.1} parent=0 // loop_pre_header
    _
  $region3: #{tpu_custom_call.1} parent=0 // loop_header
    %s12 = sphi 0, %s16
    %p13 = scmp.ge.s32.totalorder %s12, 5
    %s22 = sphi 0, %s24
    %s25 = sphi 0, %s22
    %s26 = sphi 0, %s25
    %s42 = sphi 0, %s26
    %s46 = sphi 0, %s46
    %s48 = sphi 0, %s46
    %s49 = sphi 0, %s48
    %s63 = sphi 0, %s49
    %s67 = sphi 0, %s67
    %s69 = sphi 0, %s67
    %s70 = sphi 0, %s69
    %s84 = sphi 0, %s70
    %s90 = sphi 0, %s92
    %s93 = sphi 0, %s90
    %s94 = sphi 0, %s93
    %s110 = sphi 0, %s94
    %s114 = sphi 0, %s114
    %s116 = sphi 0, %s114
    %s117 = sphi 0, %s116
    %s131 = sphi 0, %s117
    %s135 = sphi 0, %s135
    %s137 = sphi 0, %s135
    %s138 = sphi 0, %s137
    %s152 = sphi 0, %s138
    %s158 = sphi 0, %s160
    %s161 = sphi 0, %s158
    %s162 = sphi 0, %s161
    %s178 = sphi 0, %s162
  $region4: #{tpu_custom_call.1} parent=0 // loop_header_branch
    %15 = sbr.rel (%p13) target = $region8
  $region5: #{tpu_custom_call.1} parent=0 // loop_body
    %s17 = ssub.s32 %s12, 1
    %s18 = ssub.s32 %s12, 2
    %s19 = sadd.s32 %s12, 1
    %s20 = ssub.s32 %s12, %s19
    %p21 = scmp.eq.s32.totalorder %s20, 0
    %s23 = sadd.s32 %s22, 1
    %s24 = scalar_select %p21, %s22, %s23
    %p27 = pneg %p21
    %p28 = scmp.eq.s32.totalorder %s12, 2
    %p29 = por %p27, %p28
    %p30 = scmp.ne.s32.totalorder %s22, %s25
    %p31 = scmp.eq.s32.totalorder %s12, 0
    %p32 = por %p30, %p31
    %p33 = scmp.ne.s32.totalorder %s22, %s25
    %p34 = scmp.eq.s32.totalorder %s17, 2
    %p35 = por %p33, %p34
    %p36 = scmp.ne.s32.totalorder %s25, %s26
    %p37 = scmp.eq.s32.totalorder %s17, 0
    %p38 = por %p36, %p37
    %p39 = scmp.ne.s32.totalorder %s25, %s26
    %p40 = scmp.eq.s32.totalorder %s18, 2
    %p41 = por %p39, %p40
    %p43 = scmp.ne.s32.totalorder %s26, %s42
    %p44 = scmp.eq.s32.totalorder %s18, 0
    %p45 = por %p43, %p44
    %s47 = sadd.s32 %s46, 1
    %p50 = scmp.eq.s32.totalorder %s12, 2
    %p51 = scmp.ne.s32.totalorder %s46, %s48
    %p52 = scmp.eq.s32.totalorder %s12, 0
    %p53 = por %p51, %p52
    %p54 = scmp.ne.s32.totalorder %s46, %s48
    %p55 = scmp.eq.s32.totalorder %s17, 2
    %p56 = por %p54, %p55
    %p57 = scmp.ne.s32.totalorder %s48, %s49
    %p58 = scmp.eq.s32.totalorder %s17, 0
    %p59 = por %p57, %p58
    %p60 = scmp.ne.s32.totalorder %s48, %s49
    %p61 = scmp.eq.s32.totalorder %s18, 2
    %p62 = por %p60, %p61
    %p64 = scmp.ne.s32.totalorder %s49, %s63
    %p65 = scmp.eq.s32.totalorder %s18, 0
    %p66 = por %p64, %p65
    %s68 = sadd.s32 %s67, 1
    %p71 = scmp.eq.s32.totalorder %s12, 2
    %p72 = scmp.ne.s32.totalorder %s67, %s69
    %p73 = scmp.eq.s32.totalorder %s12, 0
    %p74 = por %p72, %p73
    %p75 = scmp.ne.s32.totalorder %s67, %s69
    %p76 = scmp.eq.s32.totalorder %s17, 2
    %p77 = por %p75, %p76
    %p78 = scmp.ne.s32.totalorder %s69, %s70
    %p79 = scmp.eq.s32.totalorder %s17, 0
    %p80 = por %p78, %p79
    %p81 = scmp.ne.s32.totalorder %s69, %s70
    %p82 = scmp.eq.s32.totalorder %s18, 2
    %p83 = por %p81, %p82
    %p85 = scmp.ne.s32.totalorder %s70, %s84
    %p86 = scmp.eq.s32.totalorder %s18, 0
    %p87 = por %p85, %p86
    %s88 = ssub.s32 %s12, %s19
    %p89 = scmp.eq.s32.totalorder %s88, 0
    %s91 = sadd.s32 %s90, 1
    %s92 = scalar_select %p89, %s90, %s91
    %p95 = pneg %p89
    %p96 = scmp.eq.s32.totalorder %s12, 2
    %p97 = por %p95, %p96
    %p98 = scmp.ne.s32.totalorder %s90, %s93
    %p99 = scmp.eq.s32.totalorder %s12, 0
    %p100 = por %p98, %p99
    %p101 = scmp.ne.s32.totalorder %s90, %s93
    %p102 = scmp.eq.s32.totalorder %s17, 2
    %p103 = por %p101, %p102
    %p104 = scmp.ne.s32.totalorder %s93, %s94
    %p105 = scmp.eq.s32.totalorder %s17, 0
    %p106 = por %p104, %p105
    %p107 = scmp.ne.s32.totalorder %s93, %s94
    %p108 = scmp.eq.s32.totalorder %s18, 2
    %p109 = por %p107, %p108
    %p111 = scmp.ne.s32.totalorder %s94, %s110
    %p112 = scmp.eq.s32.totalorder %s18, 0
    %p113 = por %p111, %p112
    %s115 = sadd.s32 %s114, 1
    %p118 = scmp.eq.s32.totalorder %s12, 2
    %p119 = scmp.ne.s32.totalorder %s114, %s116
    %p120 = scmp.eq.s32.totalorder %s12, 0
    %p121 = por %p119, %p120
    %p122 = scmp.ne.s32.totalorder %s114, %s116
    %p123 = scmp.eq.s32.totalorder %s17, 2
    %p124 = por %p122, %p123
    %p125 = scmp.ne.s32.totalorder %s116, %s117
    %p126 = scmp.eq.s32.totalorder %s17, 0
    %p127 = por %p125, %p126
    %p128 = scmp.ne.s32.totalorder %s116, %s117
    %p129 = scmp.eq.s32.totalorder %s18, 2
    %p130 = por %p128, %p129
    %p132 = scmp.ne.s32.totalorder %s117, %s131
    %p133 = scmp.eq.s32.totalorder %s18, 0
    %p134 = por %p132, %p133
    %s136 = sadd.s32 %s135, 1
    %p139 = scmp.eq.s32.totalorder %s12, 2
    %p140 = scmp.ne.s32.totalorder %s135, %s137
    %p141 = scmp.eq.s32.totalorder %s12, 0
    %p142 = por %p140, %p141
    %p143 = scmp.ne.s32.totalorder %s135, %s137
    %p144 = scmp.eq.s32.totalorder %s17, 2
    %p145 = por %p143, %p144
    %p146 = scmp.ne.s32.totalorder %s137, %s138
    %p147 = scmp.eq.s32.totalorder %s17, 0
    %p148 = por %p146, %p147
    %p149 = scmp.ne.s32.totalorder %s137, %s138
    %p150 = scmp.eq.s32.totalorder %s18, 2
    %p151 = por %p149, %p150
    %p153 = scmp.ne.s32.totalorder %s138, %s152
    %p154 = scmp.eq.s32.totalorder %s18, 0
    %p155 = por %p153, %p154
    %s156 = ssub.s32 %s12, %s19
    %p157 = scmp.eq.s32.totalorder %s156, 0
    %s159 = sadd.s32 %s158, 1
    %s160 = scalar_select %p157, %s158, %s159
    %p163 = pneg %p157
    %p164 = scmp.eq.s32.totalorder %s12, 2
    %p165 = por %p163, %p164
    %p166 = scmp.ne.s32.totalorder %s158, %s161
    %p167 = scmp.eq.s32.totalorder %s12, 0
    %p168 = por %p166, %p167
    %p169 = scmp.ne.s32.totalorder %s158, %s161
    %p170 = scmp.eq.s32.totalorder %s17, 2
    %p171 = por %p169, %p170
    %p172 = scmp.ne.s32.totalorder %s161, %s162
    %p173 = scmp.eq.s32.totalorder %s17, 0
    %p174 = por %p172, %p173
    %p175 = scmp.ne.s32.totalorder %s161, %s162
    %p176 = scmp.eq.s32.totalorder %s18, 2
    %p177 = por %p175, %p176
    %p179 = scmp.ne.s32.totalorder %s162, %s178
    %p180 = scmp.eq.s32.totalorder %s18, 0
    %p181 = por %p179, %p180
    %p182 = scmp.le.s32.totalorder 1, %s12
    %p183 = scmp.lt.s32.totalorder %s12, 4
    %p184 = pnand %p182, %p183
    %p185 = pneg %p184
    // Predicated region
    $region9: #{tpu_custom_call.1} parent=5 // pred_check
      _
    $region10: #{tpu_custom_call.1} parent=5 // pred_check_branch
      %187 = sbr.rel (%p184) target = $region12
    $region11: #{tpu_custom_call.1} parent=5 // pred_region
      %s188 = ssub.s32 %s12, 1
      // Predicated region
      $region13: #{tpu_custom_call.1} parent=11 // pred_check
        %p189 = pneg %p59
      $region14: #{tpu_custom_call.1} parent=11 // pred_check_branch
        %191 = sbr.rel (%p189) target = $region16
      $region15: #{tpu_custom_call.1} parent=11 // pred_region
        _
      $region16: #{tpu_custom_call.1} parent=11 // pred_fallthru
        _
      // Predicated region
      $region17: #{tpu_custom_call.1} parent=11 // pred_check
        %p192 = pneg %p80
      $region18: #{tpu_custom_call.1} parent=11 // pred_check_branch
        %194 = sbr.rel (%p192) target = $region20
      $region19: #{tpu_custom_call.1} parent=11 // pred_region
        _
      $region20: #{tpu_custom_call.1} parent=11 // pred_fallthru
        _
      // Predicated region
      $region21: #{tpu_custom_call.1} parent=11 // pred_check
        %p195 = pneg %p127
      $region22: #{tpu_custom_call.1} parent=11 // pred_check_branch
        %197 = sbr.rel (%p195) target = $region24
      $region23: #{tpu_custom_call.1} parent=11 // pred_region
        _
      $region24: #{tpu_custom_call.1} parent=11 // pred_fallthru
        _
      // Predicated region
      $region25: #{tpu_custom_call.1} parent=11 // pred_check
        %p198 = pneg %p148
      $region26: #{tpu_custom_call.1} parent=11 // pred_check_branch
        %200 = sbr.rel (%p198) target = $region28
      $region27: #{tpu_custom_call.1} parent=11 // pred_region
        _
      $region28: #{tpu_custom_call.1} parent=11 // pred_fallthru
        _
    $region12: #{tpu_custom_call.1} parent=5 // pred_fallthru
      _
    %p201 = scmp.lt.s32.totalorder %s12, 3
    // Predicated region
    $region29: #{tpu_custom_call.1} parent=5 // pred_check
      %p202 = pneg %p201
    $region30: #{tpu_custom_call.1} parent=5 // pred_check_branch
      %204 = sbr.rel (%p202) target = $region32
    $region31: #{tpu_custom_call.1} parent=5 // pred_region
      // Predicated region
      $region33: #{tpu_custom_call.1} parent=31 // pred_check
        %p205 = pneg %p32
      $region34: #{tpu_custom_call.1} parent=31 // pred_check_branch
        %207 = sbr.rel (%p205) target = $region36
      $region35: #{tpu_custom_call.1} parent=31 // pred_region
        %p208 = scmp.lt.s32.totalorder %s12, 2
        %s209 = scalar_select %p208, %s12, 2
        %s210 = smul.addr %s209, 8
        %s211 = scalar_lea.vmem %s0, %s210
      $region36: #{tpu_custom_call.1} parent=31 // pred_fallthru
        _
      // Predicated region
      $region37: #{tpu_custom_call.1} parent=31 // pred_check
        %p212 = pneg %p100
      $region38: #{tpu_custom_call.1} parent=31 // pred_check_branch
        %214 = sbr.rel (%p212) target = $region40
      $region39: #{tpu_custom_call.1} parent=31 // pred_region
        %p215 = scmp.lt.s32.totalorder %s12, 2
        %s216 = scalar_select %p215, %s12, 2
        %s217 = smul.addr %s216, 2
        %s218 = smul.addr %s217, 8
        %s219 = scalar_lea.vmem %s3, %s218
      $region40: #{tpu_custom_call.1} parent=31 // pred_fallthru
        _
    $region32: #{tpu_custom_call.1} parent=5 // pred_fallthru
      _
    %p220 = scmp.le.s32.totalorder 1, %s12
    %p221 = scmp.lt.s32.totalorder %s12, 4
    %p222 = pnand %p220, %p221
    %p223 = pneg %p222
    // Predicated region
    $region41: #{tpu_custom_call.1} parent=5 // pred_check
      _
    $region42: #{tpu_custom_call.1} parent=5 // pred_check_branch
      %225 = sbr.rel (%p222) target = $region44
    $region43: #{tpu_custom_call.1} parent=5 // pred_region
      %s226 = ssub.s32 %s12, 1
      %p227 = scmp.lt.s32.totalorder %s17, 2
      %s228 = scalar_select %p227, %s17, 2
      %s229 = smul.addr %s228, 8
      %s230 = scalar_lea.vmem %s0, %s229
      %p231 = pneg %p38
      %p232 = pneg %p35
      %p233 = pneg %p59
      %p234 = pneg %p56
      %p235 = pneg %p80
      %p236 = pneg %p77
      %p237 = scmp.lt.s32.totalorder %s17, 2
      %s238 = scalar_select %p237, %s17, 2
      %s239 = smul.addr %s238, 2
      %s240 = smul.addr %s239, 8
      %s241 = scalar_lea.vmem %s3, %s240
      %p242 = pneg %p106
      %p243 = pneg %p103
      %p244 = pneg %p127
      %p245 = pneg %p124
      %p246 = pneg %p148
      %p247 = pneg %p145
      %p248 = pneg %p174
      %p249 = pneg %p171
      %s250 = smul.u32 4, %s17
      %p251 = scmp.lt.s32.totalorder %s250, 11
      %s252 = scalar_select %p251, %s250, 11
      %s253 = smul.addr %s252, 8
      %s254 = scalar_lea.vmem %s6, %s253
      %p255 = scmp.lt.s32.totalorder %s17, 2
      %s256 = scalar_select %p255, %s17, 2
      %s257 = smul.addr %s256, 8
      %s258 = scalar_lea.vmem %s0, %s257
      %p259 = scmp.lt.s32.totalorder %s17, 2
      %s260 = scalar_select %p259, %s17, 2
      %s261 = smul.addr %s260, 2
      %s262 = smul.addr %s261, 8
      %s263 = scalar_lea.vmem %s3, %s262
      %s264 = smul.u32 4, %s17
      %p265 = scmp.lt.s32.totalorder %s264, 11
      %s266 = scalar_select %p265, %s264, 11
      %s267 = smul.addr %s266, 8
      %s268 = scalar_lea.vmem %s6, %s267
      %s269 = smul.u32 4, %s17
      %v270 = vld [vmem:[%s258] sm:$0xff]
      %v271 = vunpack.c.0.s8 %v270
      %v272 = vunpack.c.1.s8 %v270
      %v273 = vunpack.c.2.s8 %v270
      %v274 = vunpack.c.3.s8 %v270
      %v275 = vcvt.s32.f32 %v271
      %v276 = vcvt.s32.f32 %v272
      %v277 = vcvt.s32.f32 %v273
      %v278 = vcvt.s32.f32 %v274
      %v279 = vld [vmem:[%s263] sm:$0xff]
      %v280 = vld [vmem:[%s263 + $0x8] sm:$0xff]
      %v281 = vunpack.c.0.s8 %v279
      %v282 = vunpack.c.0.s8 %v280
      %v283 = vunpack.c.1.s8 %v279
      %v284 = vunpack.c.1.s8 %v280
      %v285 = vunpack.c.2.s8 %v279
      %v286 = vunpack.c.2.s8 %v280
      %v287 = vunpack.c.3.s8 %v279
      %v288 = vunpack.c.3.s8 %v280
      %v289 = vcvt.s32.f32 %v281
      %v290 = vcvt.s32.f32 %v282
      %v291 = vcvt.s32.f32 %v283
      %v292 = vcvt.s32.f32 %v284
      %v293 = vcvt.s32.f32 %v285
      %v294 = vcvt.s32.f32 %v286
      %v295 = vcvt.s32.f32 %v287
      %v296 = vcvt.s32.f32 %v288
      %v297 = vld [vmem:[%s1] sm:$0xff]
      %v298 = vld [vmem:[%s1 + $0x8] sm:$0xff]
      %v299 = vld [vmem:[%s1 + $0x10] sm:$0xff]
      %v300 = vld [vmem:[%s1 + $0x18] sm:$0xff]
      %v301 = vld [vmem:[%s1 + $0x20] sm:$0xff]
      %vm302 = vcmask 326656
      %v304 = vsel %vm302, %v275, 0
      %v307 = vsel %vm302, %v276, 0
      %v310 = vsel %vm302, %v277, 0
      %v313 = vsel %vm302, %v278, 0
      %315 = vmatprep.subr.mxu0 0.0
      %316 = vmatpush1.msra.mxu0 %v297
      %317 = vmatprep.subr.mxu0 0.0
      %318 = vmatpush1.msra.mxu0 %v298
      %319 = vmatprep.subr.mxu0 0.0
      %320 = vmatpush1.msra.mxu0 %v299
      %321 = vmatprep.subr.mxu0 0.0
      %322 = vmatpush1.msra.mxu0 %v300
      %323 = vmatprep.subr.mxu0 0.0
      %324 = vmatpush1.msra.mxu0 %v301
      %325 = vmatprep.subr.mxu0 0.0
      %326 = vmatpush1.msra.mxu0 0.0
      %327 = vmatprep.subr.mxu0 0.0
      %328 = vmatpush1.msra.mxu0 0.0
      %329 = vmatprep.subr.mxu0 0.0
      %330 = vmatpush1.msra.mxu0 0.0
      %331 = vmatprep.subr.mxu0 0.0
      %332 = vmatpush1.msra.mxu0 0.0
      %333 = vmatprep.subr.mxu0 0.0
      %334 = vmatpush1.msra.mxu0 0.0
      %335 = vmatprep.subr.mxu0 0.0
      %336 = vmatpush1.msra.mxu0 0.0
      %337 = vmatprep.subr.mxu0 0.0
      %338 = vmatpush1.msra.mxu0 0.0
      %339 = vmatprep.subr.mxu0 0.0
      %340 = vmatpush1.msra.mxu0 0.0
      %341 = vmatprep.subr.mxu0 0.0
      %342 = vmatpush1.msra.mxu0 0.0
      %343 = vmatprep.subr.mxu0 0.0
      %344 = vmatpush1.msra.mxu0 0.0
      %345 = vmatprep.subr.mxu0 0.0
      %346 = vmatpush1.msra.mxu0 0.0
      %347 = vmatprep.subr.mxu0 0.0
      %348 = vmatpush1.msra.mxu0 0.0
      %349 = vmatprep.subr.mxu0 0.0
      %350 = vmatpush1.msra.mxu0 0.0
      %351 = vmatprep.subr.mxu0 0.0
      %352 = vmatpush1.msra.mxu0 0.0
      %353 = vmatprep.subr.mxu0 0.0
      %354 = vmatpush1.msra.mxu0 0.0
      %355 = vmatprep.subr.mxu0 0.0
      %356 = vmatpush1.msra.mxu0 0.0
      %357 = vmatprep.subr.mxu0 0.0
      %358 = vmatpush1.msra.mxu0 0.0
      %359 = vmatprep.subr.mxu0 0.0
      %360 = vmatpush1.msra.mxu0 0.0
      %361 = vmatprep.subr.mxu0 0.0
      %362 = vmatpush1.msra.mxu0 0.0
      %363 = vmatprep.subr.mxu0 0.0
      %364 = vmatpush1.msra.mxu0 0.0
      %365 = vmatprep.subr.mxu0 0.0
      %366 = vmatpush1.msra.mxu0 0.0
      %367 = vmatprep.subr.mxu0 0.0
      %368 = vmatpush1.msra.mxu0 0.0
      %369 = vmatprep.subr.mxu0 0.0
      %370 = vmatpush1.msra.mxu0 0.0
      %371 = vmatprep.subr.mxu0 0.0
      %372 = vmatpush1.msra.mxu0 0.0
      %373 = vmatprep.subr.mxu0 0.0
      %374 = vmatpush1.msra.mxu0 0.0
      %375 = vmatprep.subr.mxu0 0.0
      %376 = vmatpush1.msra.mxu0 0.0
      %377 = vmatprep.subr.mxu0 0.0
      %378 = vmatpush1.msra.mxu0 0.0
      %379 = vmatprep.mubr.f32.mxu0 0.0
      %380 = vmatmul.mubr.f32.gmra.mrb[0].mxu0 %v304
      %v381 = vpop.f32.mrb[0].mxu0
      %v382 = vadd.f32 0.0, %v381
      %v383 = vpop.f32.mrb[0].mxu0
      %384 = vmatprep.mubr.f32.mxu0 0.0
      %385 = vmatmul.mubr.f32.gmra.mrb[0].mxu0 %v307
      %v386 = vpop.f32.mrb[0].mxu0
      %v387 = vadd.f32 0.0, %v386
      %v388 = vpop.f32.mrb[0].mxu0
      %389 = vmatprep.mubr.f32.mxu0 0.0
      %390 = vmatmul.mubr.f32.gmra.mrb[0].mxu0 %v310
      %v391 = vpop.f32.mrb[0].mxu0
      %v392 = vadd.f32 0.0, %v391
      %v393 = vpop.f32.mrb[0].mxu0
      %394 = vmatprep.mubr.f32.mxu0 0.0
      %395 = vmatmul.mubr.f32.gmra.mrb[0].mxu0 %v313
      %v396 = vpop.f32.mrb[0].mxu0
      %v397 = vadd.f32 0.0, %v396
      %v398 = vpop.f32.mrb[0].mxu0
      %399 = vdwg.mxu0
      %v400 = vld [vmem:[%s4] sm:$0xff]
      %v401 = vld [vmem:[%s4 + $0x8] sm:$0xff]
      %v402 = vld [vmem:[%s4 + $0x10] sm:$0xff]
      %v403 = vld [vmem:[%s4 + $0x18] sm:$0xff]
      %v404 = vld [vmem:[%s4 + $0x20] sm:$0xff]
      %v405 = vld [vmem:[%s4 + $0x28] sm:$0xff]
      %v406 = vld [vmem:[%s4 + $0x30] sm:$0xff]
      %v407 = vld [vmem:[%s4 + $0x38] sm:$0xff]
      %v408 = vld [vmem:[%s4 + $0x40] sm:$0xff]
      %v409 = vld [vmem:[%s4 + $0x48] sm:$0xff]
      %v410 = vld [vmem:[%s4 + $0x50] sm:$0xff]
      %v411 = vld [vmem:[%s4 + $0x58] sm:$0xff]
      %v412 = vld [vmem:[%s4 + $0x60] sm:$0xff]
      %v413 = vld [vmem:[%s4 + $0x68] sm:$0xff]
      %v414 = vld [vmem:[%s4 + $0x70] sm:$0xff]
      %v415 = vld [vmem:[%s4 + $0x78] sm:$0xff]
      %v416 = vld [vmem:[%s4 + $0x80] sm:$0xff]
      %v417 = vld [vmem:[%s4 + $0x88] sm:$0xff]
      %v418 = vld [vmem:[%s4 + $0x90] sm:$0xff]
      %v419 = vld [vmem:[%s4 + $0x98] sm:$0xff]
      %v420 = vld [vmem:[%s4 + $0xa0] sm:$0xff]
      %v421 = vld [vmem:[%s4 + $0xa8] sm:$0xff]
      %v422 = vld [vmem:[%s4 + $0xb0] sm:$0xff]
      %v423 = vld [vmem:[%s4 + $0xb8] sm:$0xff]
      %v424 = vld [vmem:[%s4 + $0xc0] sm:$0xff]
      %v425 = vld [vmem:[%s4 + $0xc8] sm:$0xff]
      %v426 = vld [vmem:[%s4 + $0xd0] sm:$0xff]
      %v427 = vld [vmem:[%s4 + $0xd8] sm:$0xff]
      %v428 = vld [vmem:[%s4 + $0xe0] sm:$0xff]
      %v429 = vld [vmem:[%s4 + $0xe8] sm:$0xff]
      %v430 = vld [vmem:[%s4 + $0xf0] sm:$0xff]
      %v431 = vld [vmem:[%s4 + $0xf8] sm:$0xff]
      %432 = vmatprep.subr.mxu0 0.0
      %433 = vmatpush1.msra.mxu0 %v400
      %434 = vmatprep.subr.mxu0 0.0
      %435 = vmatpush1.msra.mxu0 %v401
      %436 = vmatprep.subr.mxu0 0.0
      %437 = vmatpush1.msra.mxu0 %v402
      %438 = vmatprep.subr.mxu0 0.0
      %439 = vmatpush1.msra.mxu0 %v403
      %440 = vmatprep.subr.mxu0 0.0
      %441 = vmatpush1.msra.mxu0 %v404
      %442 = vmatprep.subr.mxu0 0.0
      %443 = vmatpush1.msra.mxu0 %v405
      %444 = vmatprep.subr.mxu0 0.0
      %445 = vmatpush1.msra.mxu0 %v406
      %446 = vmatprep.subr.mxu0 0.0
      %447 = vmatpush1.msra.mxu0 %v407
      %448 = vmatprep.subr.mxu0 0.0
      %449 = vmatpush1.msra.mxu0 %v408
      %450 = vmatprep.subr.mxu0 0.0
      %451 = vmatpush1.msra.mxu0 %v409
      %452 = vmatprep.subr.mxu0 0.0
      %453 = vmatpush1.msra.mxu0 %v410
      %454 = vmatprep.subr.mxu0 0.0
      %455 = vmatpush1.msra.mxu0 %v411
      %456 = vmatprep.subr.mxu0 0.0
      %457 = vmatpush1.msra.mxu0 %v412
      %458 = vmatprep.subr.mxu0 0.0
      %459 = vmatpush1.msra.mxu0 %v413
      %460 = vmatprep.subr.mxu0 0.0
      %461 = vmatpush1.msra.mxu0 %v414
      %462 = vmatprep.subr.mxu0 0.0
      %463 = vmatpush1.msra.mxu0 %v415
      %464 = vmatprep.subr.mxu0 0.0
      %465 = vmatpush1.msra.mxu0 %v416
      %466 = vmatprep.subr.mxu0 0.0
      %467 = vmatpush1.msra.mxu0 %v417
      %468 = vmatprep.subr.mxu0 0.0
      %469 = vmatpush1.msra.mxu0 %v418
      %470 = vmatprep.subr.mxu0 0.0
      %471 = vmatpush1.msra.mxu0 %v419
      %472 = vmatprep.subr.mxu0 0.0
      %473 = vmatpush1.msra.mxu0 %v420
      %474 = vmatprep.subr.mxu0 0.0
      %475 = vmatpush1.msra.mxu0 %v421
      %476 = vmatprep.subr.mxu0 0.0
      %477 = vmatpush1.msra.mxu0 %v422
      %478 = vmatprep.subr.mxu0 0.0
      %479 = vmatpush1.msra.mxu0 %v423
      %480 = vmatprep.subr.mxu0 0.0
      %481 = vmatpush1.msra.mxu0 %v424
      %482 = vmatprep.subr.mxu0 0.0
      %483 = vmatpush1.msra.mxu0 %v425
      %484 = vmatprep.subr.mxu0 0.0
      %485 = vmatpush1.msra.mxu0 %v426
      %486 = vmatprep.subr.mxu0 0.0
      %487 = vmatpush1.msra.mxu0 %v427
      %488 = vmatprep.subr.mxu0 0.0
      %489 = vmatpush1.msra.mxu0 %v428
      %490 = vmatprep.subr.mxu0 0.0
      %491 = vmatpush1.msra.mxu0 %v429
      %492 = vmatprep.subr.mxu0 0.0
      %493 = vmatpush1.msra.mxu0 %v430
      %494 = vmatprep.subr.mxu0 0.0
      %495 = vmatpush1.msra.mxu0 %v431
      %496 = vmatprep.mubr.f32.mxu0 %v290
      %497 = vmatmul.mubr.f32.gmra.mrb[0].mxu0 %v289
      %v498 = vpop.f32.mrb[0].mxu0
      %v499 = vadd.f32 0.0, %v498
      %v500 = vpop.f32.mrb[0].mxu0
      %501 = vmatprep.mubr.f32.mxu0 %v292
      %502 = vmatmul.mubr.f32.gmra.mrb[0].mxu0 %v291
      %v503 = vpop.f32.mrb[0].mxu0
      %v504 = vadd.f32 0.0, %v503
      %v505 = vpop.f32.mrb[0].mxu0
      %506 = vmatprep.mubr.f32.mxu0 %v294
      %507 = vmatmul.mubr.f32.gmra.mrb[0].mxu0 %v293
      %v508 = vpop.f32.mrb[0].mxu0
      %v509 = vadd.f32 0.0, %v508
      %v510 = vpop.f32.mrb[0].mxu0
      %511 = vmatprep.mubr.f32.mxu0 %v296
      %512 = vmatmul.mubr.f32.gmra.mrb[0].mxu0 %v295
      %v513 = vpop.f32.mrb[0].mxu0
      %v514 = vadd.f32 0.0, %v513
      %v515 = vpop.f32.mrb[0].mxu0
      %516 = vdwg.mxu0
      %vm517 = vcmask 130048
      %v518 = vsel %vm517, %v382, -inf
      %519 = vmax.xlane.f32.xlu0 %v518
      %v520 = vpop.xlane.xlu0 %519
      %v521 = vsel %vm517, %v387, -inf
      %522 = vmax.xlane.f32.xlu0 %v521
      %v523 = vpop.xlane.xlu0 %522
      %v524 = vsel %vm517, %v392, -inf
      %525 = vmax.xlane.f32.xlu0 %v524
      %v526 = vpop.xlane.xlu0 %525
      %v527 = vsel %vm517, %v397, -inf
      %528 = vmax.xlane.f32.xlu0 %v527
      %v529 = vpop.xlane.xlu0 %528
      %v530 = vsel %vm517, %v499, -inf
      %531 = vmax.xlane.f32.xlu0 %v530
      %v532 = vpop.xlane.xlu0 %531
      %v533 = vsel %vm517, %v504, -inf
      %534 = vmax.xlane.f32.xlu0 %v533
      %v535 = vpop.xlane.xlu0 %534
      %v536 = vsel %vm517, %v509, -inf
      %537 = vmax.xlane.f32.xlu0 %v536
      %v538 = vpop.xlane.xlu0 %537
      %v539 = vsel %vm517, %v514, -inf
      %540 = vmax.xlane.f32.xlu0 %v539
      %v541 = vpop.xlane.xlu0 %540
      %v542 = vsub.f32 %v382, %v520
      %v543 = vsub.f32 %v387, %v523
      %v544 = vsub.f32 %v392, %v526
      %v545 = vsub.f32 %v397, %v529
      %v546 = vmul.f32 %v542, 1.442695
      %v547 = vpow.pop %v546
      %v548 = vmul.f32 %v543, 1.442695
      %v549 = vpow.pop %v548
      %v550 = vmul.f32 %v544, 1.442695
      %v551 = vpow.pop %v550
      %v552 = vmul.f32 %v545, 1.442695
      %v553 = vpow.pop %v552
      %v554 = vld [vmem:[%s2] sm:$0xff]
      %v555 = vld [vmem:[%s2 + $0x8] sm:$0xff]
      %v557 = vsel %vm517, %v547, 0
      %v560 = vsel %vm517, %v549, 0
      %v563 = vsel %vm517, %v551, 0
      %v566 = vsel %vm517, %v553, 0
      %568 = vmatprep.subr.mxu0 0.0
      %569 = vmatpush1.msra.mxu0 %v554
      %570 = vmatprep.subr.mxu0 0.0
      %571 = vmatpush1.msra.mxu0 %v555
      %572 = vmatprep.subr.mxu0 0.0
      %573 = vmatpush1.msra.mxu0 0.0
      %574 = vmatprep.subr.mxu0 0.0
      %575 = vmatpush1.msra.mxu0 0.0
      %576 = vmatprep.subr.mxu0 0.0
      %577 = vmatpush1.msra.mxu0 0.0
      %578 = vmatprep.subr.mxu0 0.0
      %579 = vmatpush1.msra.mxu0 0.0
      %580 = vmatprep.subr.mxu0 0.0
      %581 = vmatpush1.msra.mxu0 0.0
      %582 = vmatprep.subr.mxu0 0.0
      %583 = vmatpush1.msra.mxu0 0.0
      %584 = vmatprep.subr.mxu0 0.0
      %585 = vmatpush1.msra.mxu0 0.0
      %586 = vmatprep.subr.mxu0 0.0
      %587 = vmatpush1.msra.mxu0 0.0
      %588 = vmatprep.subr.mxu0 0.0
      %589 = vmatpush1.msra.mxu0 0.0
      %590 = vmatprep.subr.mxu0 0.0
      %591 = vmatpush1.msra.mxu0 0.0
      %592 = vmatprep.subr.mxu0 0.0
      %593 = vmatpush1.msra.mxu0 0.0
      %594 = vmatprep.subr.mxu0 0.0
      %595 = vmatpush1.msra.mxu0 0.0
      %596 = vmatprep.subr.mxu0 0.0
      %597 = vmatpush1.msra.mxu0 0.0
      %598 = vmatprep.subr.mxu0 0.0
      %599 = vmatpush1.msra.mxu0 0.0
      %600 = vmatprep.subr.mxu0 0.0
      %601 = vmatpush1.msra.mxu0 0.0
      %602 = vmatprep.subr.mxu0 0.0
      %603 = vmatpush1.msra.mxu0 0.0
      %604 = vmatprep.subr.mxu0 0.0
      %605 = vmatpush1.msra.mxu0 0.0
      %606 = vmatprep.subr.mxu0 0.0
      %607 = vmatpush1.msra.mxu0 0.0
      %608 = vmatprep.subr.mxu0 0.0
      %609 = vmatpush1.msra.mxu0 0.0
      %610 = vmatprep.subr.mxu0 0.0
      %611 = vmatpush1.msra.mxu0 0.0
      %612 = vmatprep.subr.mxu0 0.0
      %613 = vmatpush1.msra.mxu0 0.0
      %614 = vmatprep.subr.mxu0 0.0
      %615 = vmatpush1.msra.mxu0 0.0
      %616 = vmatprep.subr.mxu0 0.0
      %617 = vmatpush1.msra.mxu0 0.0
      %618 = vmatprep.subr.mxu0 0.0
      %619 = vmatpush1.msra.mxu0 0.0
      %620 = vmatprep.subr.mxu0 0.0
      %621 = vmatpush1.msra.mxu0 0.0
      %622 = vmatprep.subr.mxu0 0.0
      %623 = vmatpush1.msra.mxu0 0.0
      %624 = vmatprep.subr.mxu0 0.0
      %625 = vmatpush1.msra.mxu0 0.0
      %626 = vmatprep.subr.mxu0 0.0
      %627 = vmatpush1.msra.mxu0 0.0
      %628 = vmatprep.subr.mxu0 0.0
      %629 = vmatpush1.msra.mxu0 0.0
      %630 = vmatprep.subr.mxu0 0.0
      %631 = vmatpush1.msra.mxu0 0.0
      %632 = vmatprep.mubr.f32.mxu0 0.0
      %633 = vmatmul.mubr.f32.gmra.mrb[0].mxu0 %v557
      %v634 = vpop.f32.mrb[0].mxu0
      %v635 = vadd.f32 0.0, %v634
      %v636 = vpop.f32.mrb[0].mxu0
      %637 = vmatprep.mubr.f32.mxu0 0.0
      %638 = vmatmul.mubr.f32.gmra.mrb[0].mxu0 %v560
      %v639 = vpop.f32.mrb[0].mxu0
      %v640 = vadd.f32 0.0, %v639
      %v641 = vpop.f32.mrb[0].mxu0
      %642 = vmatprep.mubr.f32.mxu0 0.0
      %643 = vmatmul.mubr.f32.gmra.mrb[0].mxu0 %v563
      %v644 = vpop.f32.mrb[0].mxu0
      %v645 = vadd.f32 0.0, %v644
      %v646 = vpop.f32.mrb[0].mxu0
      %647 = vmatprep.mubr.f32.mxu0 0.0
      %648 = vmatmul.mubr.f32.gmra.mrb[0].mxu0 %v566
      %v649 = vpop.f32.mrb[0].mxu0
      %v650 = vadd.f32 0.0, %v649
      %v651 = vpop.f32.mrb[0].mxu0
      %652 = vdwg.mxu0
      %v653 = vsub.f32 %v499, %v532
      %v654 = vsub.f32 %v504, %v535
      %v655 = vsub.f32 %v509, %v538
      %v656 = vsub.f32 %v514, %v541
      %v657 = vmul.f32 %v653, 1.442695
      %v658 = vpow.pop %v657
      %v659 = vmul.f32 %v654, 1.442695
      %v660 = vpow.pop %v659
      %v661 = vmul.f32 %v655, 1.442695
      %v662 = vpow.pop %v661
      %v663 = vmul.f32 %v656, 1.442695
      %v664 = vpow.pop %v663
      %v665 = vld [vmem:[%s5] sm:$0xff]
      %v666 = vld [vmem:[%s5 + $0x8] sm:$0xff]
      %v668 = vsel %vm517, %v658, 0
      %v671 = vsel %vm517, %v660, 0
      %v674 = vsel %vm517, %v662, 0
      %v677 = vsel %vm517, %v664, 0
      %679 = vmatprep.subr.mxu0 0.0
      %680 = vmatpush1.msra.mxu0 %v665
      %681 = vmatprep.subr.mxu0 0.0
      %682 = vmatpush1.msra.mxu0 %v666
      %683 = vmatprep.subr.mxu0 0.0
      %684 = vmatpush1.msra.mxu0 0.0
      %685 = vmatprep.subr.mxu0 0.0
      %686 = vmatpush1.msra.mxu0 0.0
      %687 = vmatprep.subr.mxu0 0.0
      %688 = vmatpush1.msra.mxu0 0.0
      %689 = vmatprep.subr.mxu0 0.0
      %690 = vmatpush1.msra.mxu0 0.0
      %691 = vmatprep.subr.mxu0 0.0
      %692 = vmatpush1.msra.mxu0 0.0
      %693 = vmatprep.subr.mxu0 0.0
      %694 = vmatpush1.msra.mxu0 0.0
      %695 = vmatprep.subr.mxu0 0.0
      %696 = vmatpush1.msra.mxu0 0.0
      %697 = vmatprep.subr.mxu0 0.0
      %698 = vmatpush1.msra.mxu0 0.0
      %699 = vmatprep.subr.mxu0 0.0
      %700 = vmatpush1.msra.mxu0 0.0
      %701 = vmatprep.subr.mxu0 0.0
      %702 = vmatpush1.msra.mxu0 0.0
      %703 = vmatprep.subr.mxu0 0.0
      %704 = vmatpush1.msra.mxu0 0.0
      %705 = vmatprep.subr.mxu0 0.0
      %706 = vmatpush1.msra.mxu0 0.0
      %707 = vmatprep.subr.mxu0 0.0
      %708 = vmatpush1.msra.mxu0 0.0
      %709 = vmatprep.subr.mxu0 0.0
      %710 = vmatpush1.msra.mxu0 0.0
      %711 = vmatprep.subr.mxu0 0.0
      %712 = vmatpush1.msra.mxu0 0.0
      %713 = vmatprep.subr.mxu0 0.0
      %714 = vmatpush1.msra.mxu0 0.0
      %715 = vmatprep.subr.mxu0 0.0
      %716 = vmatpush1.msra.mxu0 0.0
      %717 = vmatprep.subr.mxu0 0.0
      %718 = vmatpush1.msra.mxu0 0.0
      %719 = vmatprep.subr.mxu0 0.0
      %720 = vmatpush1.msra.mxu0 0.0
      %721 = vmatprep.subr.mxu0 0.0
      %722 = vmatpush1.msra.mxu0 0.0
      %723 = vmatprep.subr.mxu0 0.0
      %724 = vmatpush1.msra.mxu0 0.0
      %725 = vmatprep.subr.mxu0 0.0
      %726 = vmatpush1.msra.mxu0 0.0
      %727 = vmatprep.subr.mxu0 0.0
      %728 = vmatpush1.msra.mxu0 0.0
      %729 = vmatprep.subr.mxu0 0.0
      %730 = vmatpush1.msra.mxu0 0.0
      %731 = vmatprep.subr.mxu0 0.0
      %732 = vmatpush1.msra.mxu0 0.0
      %733 = vmatprep.subr.mxu0 0.0
      %734 = vmatpush1.msra.mxu0 0.0
      %735 = vmatprep.subr.mxu0 0.0
      %736 = vmatpush1.msra.mxu0 0.0
      %737 = vmatprep.subr.mxu0 0.0
      %738 = vmatpush1.msra.mxu0 0.0
      %739 = vmatprep.subr.mxu0 0.0
      %740 = vmatpush1.msra.mxu0 0.0
      %741 = vmatprep.subr.mxu0 0.0
      %742 = vmatpush1.msra.mxu0 0.0
      %743 = vmatprep.mubr.f32.mxu0 0.0
      %744 = vmatmul.mubr.f32.gmra.mrb[0].mxu0 %v668
      %v745 = vpop.f32.mrb[0].mxu0
      %v746 = vadd.f32 0.0, %v745
      %v747 = vpop.f32.mrb[0].mxu0
      %748 = vmatprep.mubr.f32.mxu0 0.0
      %749 = vmatmul.mubr.f32.gmra.mrb[0].mxu0 %v671
      %v750 = vpop.f32.mrb[0].mxu0
      %v751 = vadd.f32 0.0, %v750
      %v752 = vpop.f32.mrb[0].mxu0
      %753 = vmatprep.mubr.f32.mxu0 0.0
      %754 = vmatmul.mubr.f32.gmra.mrb[0].mxu0 %v674
      %v755 = vpop.f32.mrb[0].mxu0
      %v756 = vadd.f32 0.0, %v755
      %v757 = vpop.f32.mrb[0].mxu0
      %758 = vmatprep.mubr.f32.mxu0 0.0
      %759 = vmatmul.mubr.f32.gmra.mrb[0].mxu0 %v677
      %v760 = vpop.f32.mrb[0].mxu0
      %v761 = vadd.f32 0.0, %v760
      %v762 = vpop.f32.mrb[0].mxu0
      %763 = vdwg.mxu0
      %v764 = vlog2.pop %v635
      %v765 = vmul.f32 %v764, 0.6931472
      %v766 = vlog2.pop %v640
      %v767 = vmul.f32 %v766, 0.6931472
      %v768 = vlog2.pop %v645
      %v769 = vmul.f32 %v768, 0.6931472
      %v770 = vlog2.pop %v650
      %v771 = vmul.f32 %v770, 0.6931472
      %v772 = vadd.f32 %v765, %v520
      %v773 = vadd.f32 %v767, %v523
      %v774 = vadd.f32 %v769, %v526
      %v775 = vadd.f32 %v771, %v529
      %v776 = vlog2.pop %v746
      %v777 = vmul.f32 %v776, 0.6931472
      %v778 = vlog2.pop %v751
      %v779 = vmul.f32 %v778, 0.6931472
      %v780 = vlog2.pop %v756
      %v781 = vmul.f32 %v780, 0.6931472
      %v782 = vlog2.pop %v761
      %v783 = vmul.f32 %v782, 0.6931472
      %v784 = vadd.f32 %v772, %v777
      %v785 = vadd.f32 %v773, %v779
      %v786 = vadd.f32 %v774, %v781
      %v787 = vadd.f32 %v775, %v783
      %v788 = vadd.f32 %v784, %v532
      %v789 = vadd.f32 %v785, %v535
      %v790 = vadd.f32 %v786, %v538
      %v791 = vadd.f32 %v787, %v541
      %vm792 = vcmask 15360
      %793 = vst.msk [vmem:[%s268] sm:$0xff] %vm792, %v788
      %794 = vst.msk [vmem:[%s268 + $0x8] sm:$0xff] %vm792, %v789
      %795 = vst.msk [vmem:[%s268 + $0x10] sm:$0xff] %vm792, %v790
      %796 = vst.msk [vmem:[%s268 + $0x18] sm:$0xff] %vm792, %v791
      %s797 = smul.u32 4, %s17
      %p798 = scmp.lt.s32.totalorder %s797, 11
      %s799 = scalar_select %p798, %s797, 11
      %s800 = smul.addr %s799, 8
      %s801 = scalar_lea.vmem %s6, %s800
      // Predicated region
      $region45: #{tpu_custom_call.1} parent=43 // pred_check
        %p802 = pneg %p171
      $region46: #{tpu_custom_call.1} parent=43 // pred_check_branch
        %804 = sbr.rel (%p802) target = $region48
      $region47: #{tpu_custom_call.1} parent=43 // pred_region
        %s805 = smul.u32 4, %s17
      $region48: #{tpu_custom_call.1} parent=43 // pred_fallthru
        _
    $region44: #{tpu_custom_call.1} parent=5 // pred_fallthru
      _
    %p806 = scmp.le.s32.totalorder 2, %s12
    // Predicated region
    $region49: #{tpu_custom_call.1} parent=5 // pred_check
      %p807 = pneg %p806
    $region50: #{tpu_custom_call.1} parent=5 // pred_check_branch
      %809 = sbr.rel (%p807) target = $region52
    $region51: #{tpu_custom_call.1} parent=5 // pred_region
      %s810 = ssub.s32 %s12, 2
      // Predicated region
      $region53: #{tpu_custom_call.1} parent=51 // pred_check
        %p811 = pneg %p177
      $region54: #{tpu_custom_call.1} parent=51 // pred_check_branch
        %813 = sbr.rel (%p811) target = $region56
      $region55: #{tpu_custom_call.1} parent=51 // pred_region
        %s814 = smul.u32 4, %s18
        %p815 = scmp.lt.s32.totalorder %s814, 11
        %s816 = scalar_select %p815, %s814, 11
        %s817 = smul.addr %s816, 8
        %s818 = scalar_lea.vmem %s6, %s817
      $region56: #{tpu_custom_call.1} parent=51 // pred_fallthru
        _
    $region52: #{tpu_custom_call.1} parent=5 // pred_fallthru
      _
  $region6: #{tpu_custom_call.1} parent=0 // loop_footer
    %s16 = sadd.s32 1, %s12
  $region7: #{tpu_custom_call.1} parent=0 // loop_footer_branch
    %11 = sbr.rel target = $region3
  $region8: #{tpu_custom_call.1} parent=0 // loop_exit
    _

</llo_original>
